<compile_context>
chip_gen: v7x
topology: tpu7x:2x2x1
jax: 0.10.0
libtpu: 0.0.40
codegen_flags: <defaults>
</compile_context>

<pallas_src>
import jax
import jax.numpy as jnp
from jax.experimental import pallas as pl
from jax.experimental.pallas import tpu as pltpu

HINT_RATE = 0.7
LEAK = 0.2
LANE = 128


def _round_up(x, m):
    return (x + m - 1) // m * m


def _vmem_limit_bytes():
    """~half of physical VMEM: 64 MiB on v5e/v6e (128 MiB), 32 MiB on v7x (64 MiB)."""
    cap = 64 * 1024 * 1024
    try:
        cap = int(getattr(pltpu.get_tpu_info(), "vmem_capacity_bytes", cap))
    except Exception:
        pass
    return max(32 * 1024 * 1024, min(cap // 2, 96 * 1024 * 1024))


def _make_kernel(n_layers):
    """Kernel over one batch tile; weights/biases are whole-array VMEM refs."""

    def kernel(x_ref, *refs):
        w_refs = refs[:n_layers]                    # bf16, per-layer padded
        b_refs = refs[n_layers:2 * n_layers]        # f32,  (1, fout_pad)
        out_ref = refs[2 * n_layers]                # bf16, (TILE_B, out_pad)

        h = x_ref[...]                              # (TILE_B, K0_pad) bf16
        for i in range(n_layers - 1):
            a = (jnp.dot(h, w_refs[i][...], preferred_element_type=jnp.float32)
                 + b_refs[i][...])
            a = jnp.maximum(a, LEAK * a)            # LeakyReLU(0.2)
            # Dropout(0.5): identity in inference/eval mode.
            # TODO(synk): training-mode dropout (random masking) not reproduced.
            h = a.astype(jnp.bfloat16)

        logits = (jnp.dot(h, w_refs[-1][...], preferred_element_type=jnp.float32)
                  + b_refs[-1][...])
        out_ref[...] = jax.nn.sigmoid(logits).astype(out_ref.dtype)

    return kernel


def init_params(key, input_dim, discriminator_dim):
    """PyTorch-like Linear params: weights (in, out) f32, biases (1, out) f32."""
    layer_shapes = []
    d = input_dim
    layer_shapes.append((d, d))                      # Linear(dim, dim)
    for item in list(discriminator_dim):
        layer_shapes.append((d, item))               # Linear(dim, item)
        d = item
    layer_shapes.append((d, d))                      # Linear(dim, dim)
    layer_shapes.append((d, input_dim))              # Linear(dim, input_dim)

    params = []
    for fin, fout in layer_shapes:
        key, wk, bk = jax.random.split(key, 3)
        bound = 1.0 / float(fin) ** 0.5              # PyTorch default init range
        w = jax.random.uniform(wk, (fin, fout), jnp.float32, -bound, bound)
        b = jax.random.uniform(bk, (1, fout), jnp.float32, -bound, bound)
        params += [w, b]
    return params


def pack_params(params):
    """Per-layer padding to (round_up(fin,128), round_up(fout,128)); weights bf16."""
    ws = params[0::2]
    bs = params[1::2]
    w_pads, b_pads = [], []
    for w, b in zip(ws, bs):
        fin, fout = w.shape
        fin_p, fout_p = _round_up(fin, LANE), _round_up(fout, LANE)
        w_pads.append(jnp.pad(w, ((0, fin_p - fin), (0, fout_p - fout)))
                      .astype(jnp.bfloat16))
        b_pads.append(jnp.pad(b.reshape(1, -1), ((0, 0), (0, fout_p - fout)))
                      .astype(jnp.float32))
    in_dim = ws[0].shape[0]
    out_dim = ws[-1].shape[1]
    return w_pads, b_pads, in_dim, out_dim


def discriminator_forward(x_hat, mask, packed, key, *, tile_b=256):
    w_pads, b_pads, in_dim, out_dim = packed
    n_layers = len(w_pads)
    n = x_hat.shape[0]
    k0_pad = w_pads[0].shape[0]
    out_pad = w_pads[-1].shape[1]

    # hint = (U(0,1) < hint_rate).float() * mask   (host-side RNG; same
    # distribution as the module's torch Uniform(0,1) draw).
    bern = (jax.random.uniform(key, mask.shape) < HINT_RATE).astype(jnp.float32)
    hint = mask.astype(jnp.float32) * bern

    # Single concatenated input stream (one DMA stream, one layer-0 matmul).
    inp = jnp.concatenate([x_hat.astype(jnp.float32), hint], axis=1)
    assert inp.shape[1] == in_dim, (inp.shape, in_dim)

    # Batch tile: multiple of 16 (bf16 sublane packing), capped so padding is
    # bounded, split so the grid has >=2 steps when the batch allows it
    # (megacore sharding on v7x + DMA/compute pipelining).
    n16 = _round_up(max(n, 16), 16)
    tb = min(tile_b, n16)
    if n16 // tb < 2 and n16 >= 32:
        tb = _round_up(n16 // 2, 16)
    n_pad = _round_up(n16, tb)

    inp_p = jnp.pad(inp.astype(jnp.bfloat16),
                    ((0, n_pad - n), (0, k0_pad - in_dim)))

    act_spec = pl.BlockSpec((tb, k0_pad), lambda i: (i, 0))
    out_spec = pl.BlockSpec((tb, out_pad), lambda i: (i, 0))
    # Grid-invariant parameters: whole-array VMEM residents (no per-step DMA,
    # no double buffering of the weight stack).
    param_spec = pl.BlockSpec(memory_space=pltpu.MemorySpace.VMEM)

    out = pl.pallas_call(
        _make_kernel(n_layers),
        out_shape=jax.ShapeDtypeStruct((n_pad, out_pad), jnp.bfloat16),
        grid=(n_pad // tb,),
        in_specs=[act_spec] + [param_spec] * (2 * n_layers),
        out_specs=out_spec,
        compiler_params=pltpu.CompilerParams(
            dimension_semantics=("parallel",),       # shard batch tiles on v7x
            vmem_limit_bytes=_vmem_limit_bytes(),
        ),
    )(inp_p, *w_pads, *b_pads)
    return out[:n, :out_dim].astype(jnp.float32)


def reference_forward(x_hat, hint, params):
    """Pure-JAX reference with the same bf16-weight / f32-accumulate math."""
    ws = params[0::2]
    bs = [b.reshape(1, -1) for b in params[1::2]]
    h = jnp.concatenate([x_hat, hint], axis=1)
    for i in range(len(ws) - 1):
        a = (jnp.dot(h.astype(jnp.bfloat16), ws[i].astype(jnp.bfloat16),
                     preferred_element_type=jnp.float32) + bs[i])
        h = jnp.maximum(a, LEAK * a)
    logits = (jnp.dot(h.astype(jnp.bfloat16), ws[-1].astype(jnp.bfloat16),
                      preferred_element_type=jnp.float32) + bs[-1])
    return jax.nn.sigmoid(logits)


if __name__ == "__main__":
    key = jax.random.PRNGKey(0)

    # Small, self-consistent shapes: x_hat/mask have data_dim features; the
    # module's first Linear sees concat([x_hat, hint]) so input_dim = 2*data_dim.
    data_dim = 8
    input_dim = 2 * data_dim
    discriminator_dim = (32, 32)
    batch = 64                                       # pac = 1; gives a 2-step grid

    kx, km, kp, kh = jax.random.split(key, 4)
    x_hat = jax.random.normal(kx, (batch, data_dim), dtype=jnp.float32)
    mask = (jax.random.uniform(km, (batch, data_dim)) < 0.5).astype(jnp.float32)
    params = init_params(kp, input_dim, discriminator_dim)
    packed = pack_params(params)

    out = discriminator_forward(x_hat, mask, packed, kh)
    out = jax.block_until_ready(out)

    assert out.shape == (batch, input_dim), out.shape
    assert bool(jnp.all((out >= 0.0) & (out <= 1.0)))   # sigmoid range

    # Correctness vs. pure-JAX reference (same hint realization, same bf16 math).
    bern = (jax.random.uniform(kh, mask.shape) < HINT_RATE).astype(jnp.float32)
    ref = reference_forward(x_hat, mask * bern, params)
    assert bool(jnp.allclose(out, ref, atol=1e-2, rtol=1e-2)), (
        float(jnp.max(jnp.abs(out - ref))))

    print("KERNEL_OK")
</pallas_src>

<mosaic_0001>
module attributes {stable_mosaic.version = 11 : i64} {
  func.func @kernel(%arg0: i32, %arg1: memref<32x128xbf16, #tpu.memory_space<vmem>>, %arg2: memref<128x128xbf16, #tpu.memory_space<vmem>>, %arg3: memref<128x128xbf16, #tpu.memory_space<vmem>>, %arg4: memref<128x128xbf16, #tpu.memory_space<vmem>>, %arg5: memref<128x128xbf16, #tpu.memory_space<vmem>>, %arg6: memref<128x128xbf16, #tpu.memory_space<vmem>>, %arg7: memref<1x128xf32, #tpu.memory_space<vmem>>, %arg8: memref<1x128xf32, #tpu.memory_space<vmem>>, %arg9: memref<1x128xf32, #tpu.memory_space<vmem>>, %arg10: memref<1x128xf32, #tpu.memory_space<vmem>>, %arg11: memref<1x128xf32, #tpu.memory_space<vmem>>, %arg12: memref<32x128xbf16, #tpu.memory_space<vmem>>) attributes {dimension_semantics = [#tpu.dimension_semantics<parallel>], iteration_bounds = array<i64: 2>, scalar_prefetch = 0 : i64, scratch_operands = 0 : i64, tpu.core_type = #tpu.core_type<tc>, window_params = [{transform_indices = @transform_0, window_bounds = array<i64: 32, 128>}, {pipeline_mode = #tpu.pipeline_mode<synchronous>, transform_indices = @transform_1, window_bounds = array<i64: 128, 128>}, {pipeline_mode = #tpu.pipeline_mode<synchronous>, transform_indices = @transform_2, window_bounds = array<i64: 128, 128>}, {pipeline_mode = #tpu.pipeline_mode<synchronous>, transform_indices = @transform_3, window_bounds = array<i64: 128, 128>}, {pipeline_mode = #tpu.pipeline_mode<synchronous>, transform_indices = @transform_4, window_bounds = array<i64: 128, 128>}, {pipeline_mode = #tpu.pipeline_mode<synchronous>, transform_indices = @transform_5, window_bounds = array<i64: 128, 128>}, {pipeline_mode = #tpu.pipeline_mode<synchronous>, transform_indices = @transform_6, window_bounds = array<i64: 1, 128>}, {pipeline_mode = #tpu.pipeline_mode<synchronous>, transform_indices = @transform_7, window_bounds = array<i64: 1, 128>}, {pipeline_mode = #tpu.pipeline_mode<synchronous>, transform_indices = @transform_8, window_bounds = array<i64: 1, 128>}, {pipeline_mode = #tpu.pipeline_mode<synchronous>, transform_indices = @transform_9, window_bounds = array<i64: 1, 128>}, {pipeline_mode = #tpu.pipeline_mode<synchronous>, transform_indices = @transform_10, window_bounds = array<i64: 1, 128>}, {transform_indices = @transform_11, window_bounds = array<i64: 32, 128>}]} {
    %c0 = arith.constant 0 : index
    %c0_0 = arith.constant 0 : index
    %0 = vector.load %arg1[%c0, %c0_0] : memref<32x128xbf16, #tpu.memory_space<vmem>>, vector<32x128xbf16>
    %c0_1 = arith.constant 0 : index
    %c0_2 = arith.constant 0 : index
    %1 = vector.load %arg2[%c0_1, %c0_2] : memref<128x128xbf16, #tpu.memory_space<vmem>>, vector<128x128xbf16>
    %cst = arith.constant dense<0.000000e+00> : vector<32x128xf32>
    %2 = tpu.matmul %0, %1, %cst {dimension_numbers = #tpu.dot_dimension_numbers<[1], [0], [0], [1], [0, 0, 1, 1], [], []>} : vector<32x128xbf16>, vector<128x128xbf16>, vector<32x128xf32> -> vector<32x128xf32>
    %c0_3 = arith.constant 0 : index
    %c0_4 = arith.constant 0 : index
    %3 = vector.load %arg7[%c0_3, %c0_4] : memref<1x128xf32, #tpu.memory_space<vmem>>, vector<1x128xf32>
    %4 = vector.broadcast %3 : vector<1x128xf32> to vector<32x128xf32>
    %5 = arith.addf %2, %4 : vector<32x128xf32>
    %cst_5 = arith.constant 2.000000e-01 : f32
    %6 = vector.broadcast %cst_5 : f32 to vector<32x128xf32>
    %7 = arith.mulf %6, %5 : vector<32x128xf32>
    %8 = arith.maximumf %5, %7 : vector<32x128xf32>
    %9 = arith.truncf %8 : vector<32x128xf32> to vector<32x128xbf16>
    %c0_6 = arith.constant 0 : index
    %c0_7 = arith.constant 0 : index
    %10 = vector.load %arg3[%c0_6, %c0_7] : memref<128x128xbf16, #tpu.memory_space<vmem>>, vector<128x128xbf16>
    %cst_8 = arith.constant dense<0.000000e+00> : vector<32x128xf32>
    %11 = tpu.matmul %9, %10, %cst_8 {dimension_numbers = #tpu.dot_dimension_numbers<[1], [0], [0], [1], [0, 0, 1, 1], [], []>} : vector<32x128xbf16>, vector<128x128xbf16>, vector<32x128xf32> -> vector<32x128xf32>
    %c0_9 = arith.constant 0 : index
    %c0_10 = arith.constant 0 : index
    %12 = vector.load %arg8[%c0_9, %c0_10] : memref<1x128xf32, #tpu.memory_space<vmem>>, vector<1x128xf32>
    %13 = vector.broadcast %12 : vector<1x128xf32> to vector<32x128xf32>
    %14 = arith.addf %11, %13 : vector<32x128xf32>
    %cst_11 = arith.constant 2.000000e-01 : f32
    %15 = vector.broadcast %cst_11 : f32 to vector<32x128xf32>
    %16 = arith.mulf %15, %14 : vector<32x128xf32>
    %17 = arith.maximumf %14, %16 : vector<32x128xf32>
    %18 = arith.truncf %17 : vector<32x128xf32> to vector<32x128xbf16>
    %c0_12 = arith.constant 0 : index
    %c0_13 = arith.constant 0 : index
    %19 = vector.load %arg4[%c0_12, %c0_13] : memref<128x128xbf16, #tpu.memory_space<vmem>>, vector<128x128xbf16>
    %cst_14 = arith.constant dense<0.000000e+00> : vector<32x128xf32>
    %20 = tpu.matmul %18, %19, %cst_14 {dimension_numbers = #tpu.dot_dimension_numbers<[1], [0], [0], [1], [0, 0, 1, 1], [], []>} : vector<32x128xbf16>, vector<128x128xbf16>, vector<32x128xf32> -> vector<32x128xf32>
    %c0_15 = arith.constant 0 : index
    %c0_16 = arith.constant 0 : index
    %21 = vector.load %arg9[%c0_15, %c0_16] : memref<1x128xf32, #tpu.memory_space<vmem>>, vector<1x128xf32>
    %22 = vector.broadcast %21 : vector<1x128xf32> to vector<32x128xf32>
    %23 = arith.addf %20, %22 : vector<32x128xf32>
    %cst_17 = arith.constant 2.000000e-01 : f32
    %24 = vector.broadcast %cst_17 : f32 to vector<32x128xf32>
    %25 = arith.mulf %24, %23 : vector<32x128xf32>
    %26 = arith.maximumf %23, %25 : vector<32x128xf32>
    %27 = arith.truncf %26 : vector<32x128xf32> to vector<32x128xbf16>
    %c0_18 = arith.constant 0 : index
    %c0_19 = arith.constant 0 : index
    %28 = vector.load %arg5[%c0_18, %c0_19] : memref<128x128xbf16, #tpu.memory_space<vmem>>, vector<128x128xbf16>
    %cst_20 = arith.constant dense<0.000000e+00> : vector<32x128xf32>
    %29 = tpu.matmul %27, %28, %cst_20 {dimension_numbers = #tpu.dot_dimension_numbers<[1], [0], [0], [1], [0, 0, 1, 1], [], []>} : vector<32x128xbf16>, vector<128x128xbf16>, vector<32x128xf32> -> vector<32x128xf32>
    %c0_21 = arith.constant 0 : index
    %c0_22 = arith.constant 0 : index
    %30 = vector.load %arg10[%c0_21, %c0_22] : memref<1x128xf32, #tpu.memory_space<vmem>>, vector<1x128xf32>
    %31 = vector.broadcast %30 : vector<1x128xf32> to vector<32x128xf32>
    %32 = arith.addf %29, %31 : vector<32x128xf32>
    %cst_23 = arith.constant 2.000000e-01 : f32
    %33 = vector.broadcast %cst_23 : f32 to vector<32x128xf32>
    %34 = arith.mulf %33, %32 : vector<32x128xf32>
    %35 = arith.maximumf %32, %34 : vector<32x128xf32>
    %36 = arith.truncf %35 : vector<32x128xf32> to vector<32x128xbf16>
    %c0_24 = arith.constant 0 : index
    %c0_25 = arith.constant 0 : index
    %37 = vector.load %arg6[%c0_24, %c0_25] : memref<128x128xbf16, #tpu.memory_space<vmem>>, vector<128x128xbf16>
    %cst_26 = arith.constant dense<0.000000e+00> : vector<32x128xf32>
    %38 = tpu.matmul %36, %37, %cst_26 {dimension_numbers = #tpu.dot_dimension_numbers<[1], [0], [0], [1], [0, 0, 1, 1], [], []>} : vector<32x128xbf16>, vector<128x128xbf16>, vector<32x128xf32> -> vector<32x128xf32>
    %c0_27 = arith.constant 0 : index
    %c0_28 = arith.constant 0 : index
    %39 = vector.load %arg11[%c0_27, %c0_28] : memref<1x128xf32, #tpu.memory_space<vmem>>, vector<1x128xf32>
    %40 = vector.broadcast %39 : vector<1x128xf32> to vector<32x128xf32>
    %41 = arith.addf %38, %40 : vector<32x128xf32>
    %42 = arith.negf %41 : vector<32x128xf32>
    %43 = math.exp %42 : vector<32x128xf32>
    %cst_29 = arith.constant 1.000000e+00 : f32
    %44 = vector.broadcast %cst_29 : f32 to vector<32x128xf32>
    %45 = arith.addf %44, %43 : vector<32x128xf32>
    %46 = arith.divf %44, %45 : vector<32x128xf32>
    %47 = arith.truncf %46 : vector<32x128xf32> to vector<32x128xbf16>
    %c0_30 = arith.constant 0 : index
    %c0_31 = arith.constant 0 : index
    %48 = vector.load %arg12[%c0_30, %c0_31] : memref<32x128xbf16, #tpu.memory_space<vmem>>, vector<32x128xbf16>
    tpu.vector_store %arg12[%c0_30, %c0_31], %47 {strides = array<i32>} : memref<32x128xbf16, #tpu.memory_space<vmem>>, vector<32x128xbf16>,
    return
  }
  func.func @transform_0(%arg0: i32) -> (i32, i32) {
    %c0_i32 = arith.constant 0 : i32
    %c0_i32_0 = arith.constant 0 : i32
    return %arg0, %c0_i32 : i32, i32
  }
  func.func @transform_1(%arg0: i32) -> (i32, i32) {
    %c0_i32 = arith.constant 0 : i32
    %c0_i32_0 = arith.constant 0 : i32
    %c0_i32_1 = arith.constant 0 : i32
    return %c0_i32, %c0_i32_0 : i32, i32
  }
  func.func @transform_2(%arg0: i32) -> (i32, i32) {
    %c0_i32 = arith.constant 0 : i32
    %c0_i32_0 = arith.constant 0 : i32
    %c0_i32_1 = arith.constant 0 : i32
    return %c0_i32, %c0_i32_0 : i32, i32
  }
  func.func @transform_3(%arg0: i32) -> (i32, i32) {
    %c0_i32 = arith.constant 0 : i32
    %c0_i32_0 = arith.constant 0 : i32
    %c0_i32_1 = arith.constant 0 : i32
    return %c0_i32, %c0_i32_0 : i32, i32
  }
  func.func @transform_4(%arg0: i32) -> (i32, i32) {
    %c0_i32 = arith.constant 0 : i32
    %c0_i32_0 = arith.constant 0 : i32
    %c0_i32_1 = arith.constant 0 : i32
    return %c0_i32, %c0_i32_0 : i32, i32
  }
  func.func @transform_5(%arg0: i32) -> (i32, i32) {
    %c0_i32 = arith.constant 0 : i32
    %c0_i32_0 = arith.constant 0 : i32
    %c0_i32_1 = arith.constant 0 : i32
    return %c0_i32, %c0_i32_0 : i32, i32
  }
  func.func @transform_6(%arg0: i32) -> (i32, i32) {
    %c0_i32 = arith.constant 0 : i32
    %c0_i32_0 = arith.constant 0 : i32
    %c0_i32_1 = arith.constant 0 : i32
    return %c0_i32, %c0_i32_0 : i32, i32
  }
  func.func @transform_7(%arg0: i32) -> (i32, i32) {
    %c0_i32 = arith.constant 0 : i32
    %c0_i32_0 = arith.constant 0 : i32
    %c0_i32_1 = arith.constant 0 : i32
    return %c0_i32, %c0_i32_0 : i32, i32
  }
  func.func @transform_8(%arg0: i32) -> (i32, i32) {
    %c0_i32 = arith.constant 0 : i32
    %c0_i32_0 = arith.constant 0 : i32
    %c0_i32_1 = arith.constant 0 : i32
    return %c0_i32, %c0_i32_0 : i32, i32
  }
  func.func @transform_9(%arg0: i32) -> (i32, i32) {
    %c0_i32 = arith.constant 0 : i32
    %c0_i32_0 = arith.constant 0 : i32
    %c0_i32_1 = arith.constant 0 : i32
    return %c0_i32, %c0_i32_0 : i32, i32
  }
  func.func @transform_10(%arg0: i32) -> (i32, i32) {
    %c0_i32 = arith.constant 0 : i32
    %c0_i32_0 = arith.constant 0 : i32
    %c0_i32_1 = arith.constant 0 : i32
    return %c0_i32, %c0_i32_0 : i32, i32
  }
  func.func @transform_11(%arg0: i32) -> (i32, i32) {
    %c0_i32 = arith.constant 0 : i32
    %c0_i32_0 = arith.constant 0 : i32
    return %arg0, %c0_i32 : i32, i32
  }
}

</mosaic_0001>

<llo_original>
// kernel: tpu_custom_call.1
$region0: #{tpu_custom_call.1}
  #allocation0 [shape = 'u32[]', space=smem, size = 0x4, offset = 0x4, fixed_abs, tag = 'smem constant byte address 0x4 - core index']
  #allocation1 [shape = 'u32[144,128]{1,0:T(1,128)}', space=vmem, size = 0x12000, scoped, tag = 'internal scratch']
  %s0 = inlined_call_operand.hbm [shape: bf16[64,128], index: 0, kind: input, shape index: {}]
  %s1 = inlined_call_operand.hbm [shape: bf16[128,128], index: 1, kind: input, shape index: {}]
  %s2 = inlined_call_operand.hbm [shape: bf16[128,128], index: 2, kind: input, shape index: {}]
  %s3 = inlined_call_operand.hbm [shape: bf16[128,128], index: 3, kind: input, shape index: {}]
  %s4 = inlined_call_operand.hbm [shape: bf16[128,128], index: 4, kind: input, shape index: {}]
  %s5 = inlined_call_operand.hbm [shape: bf16[128,128], index: 5, kind: input, shape index: {}]
  %s6 = inlined_call_operand.vmem [shape: f32[1,128], index: 6, kind: input, shape index: {}]
  %s7 = inlined_call_operand.vmem [shape: f32[1,128], index: 7, kind: input, shape index: {}]
  %s8 = inlined_call_operand.vmem [shape: f32[1,128], index: 8, kind: input, shape index: {}]
  %s9 = inlined_call_operand.vmem [shape: f32[1,128], index: 9, kind: input, shape index: {}]
  %s10 = inlined_call_operand.vmem [shape: f32[1,128], index: 10, kind: input, shape index: {}]
  %s11 = inlined_call_operand.hbm [shape: bf16[64,128], index: 11, kind: output, shape index: {}]
  %s12 = sld [smem:[#allocation0]]
  $region101: #{tpu_custom_call.1} parent=0
    _
  %s14 = ssub.s32 1, %s12
  %s15 = scalar_select 0, %s14, %s12
  $region1: #{tpu_custom_call.1} parent=0
    #allocation2 [shape = 'u8[16384]{0}', space=vmem, size = 0x4000, scoped, tag = 'input window, operand 0']
    #allocation3 [shape = 's32[2]{0}', space=sflag, size = 0x8, scoped, tag = 'scoped memory for tpu_custom_call.1']
    #allocation4 [shape = 's32[2]{0}', space=sflag, size = 0x8, scoped, tag = 'scoped memory for tpu_custom_call.1']
    #allocation5 [shape = 'u8[32768]{0}', space=vmem, size = 0x8000, scoped, tag = 'input window, operand 1, single buffered']
    #allocation6 [shape = 's32[1]{0}', space=sflag, size = 0x4, scoped, tag = 'scoped memory for tpu_custom_call.1']
    #allocation7 [shape = 'u8[32768]{0}', space=vmem, size = 0x8000, scoped, tag = 'input window, operand 2, single buffered']
    #allocation8 [shape = 'u8[32768]{0}', space=vmem, size = 0x8000, scoped, tag = 'input window, operand 3, single buffered']
    #allocation9 [shape = 's32[1]{0}', space=sflag, size = 0x4, scoped, tag = 'scoped memory for tpu_custom_call.1']
    #allocation10 [shape = 'u8[32768]{0}', space=vmem, size = 0x8000, scoped, tag = 'input window, operand 4, single buffered']
    #allocation11 [shape = 'u8[32768]{0}', space=vmem, size = 0x8000, scoped, tag = 'input window, operand 5, single buffered']
    #allocation12 [shape = 's32[1]{0}', space=sflag, size = 0x4, scoped, tag = 'scoped memory for tpu_custom_call.1']
    #allocation13 [shape = 'u8[16384]{0}', space=vmem, size = 0x4000, scoped, tag = 'output window, operand 0']
    %16 = vsyncpa [#allocation3], 0
    %s17 = scalar_lea.sflag [#allocation3], 1
    %18 = vsyncpa %s17, 0
    %19 = vsyncpa [#allocation6], 0
    %20 = vsyncpa [#allocation9], 0
    %21 = vsyncpa [#allocation12], 0
    %22 = vsyncpa [#allocation4], 0
    %s23 = scalar_lea.sflag [#allocation4], 1
    %24 = vsyncpa %s23, 0
    loop: start=0, step=1, limit=4
    $region2: #{tpu_custom_call.1} parent=1 // loop_pre_header
      _
    $region3: #{tpu_custom_call.1} parent=1 // loop_header
      %s26 = sphi 0, %s30
      %p27 = scmp.ge.s32.totalorder %s26, 4
      %s36 = sphi 0, %s38
      %s39 = sphi 0, %s36
      %s40 = sphi 0, %s39
      %s56 = sphi 0, %s40
      %s60 = sphi 0, %s60
      %s62 = sphi 0, %s60
      %s63 = sphi 0, %s62
      %s77 = sphi 0, %s63
      %s81 = sphi 0, %s81
      %s83 = sphi 0, %s81
      %s84 = sphi 0, %s83
      %s98 = sphi 0, %s84
      %s102 = sphi 0, %s102
      %s104 = sphi 0, %s102
      %s105 = sphi 0, %s104
      %s119 = sphi 0, %s105
      %s123 = sphi 0, %s123
      %s125 = sphi 0, %s123
      %s126 = sphi 0, %s125
      %s140 = sphi 0, %s126
      %s144 = sphi 0, %s144
      %s146 = sphi 0, %s144
      %s147 = sphi 0, %s146
      %s161 = sphi 0, %s147
      %s165 = sphi 0, %s165
      %s167 = sphi 0, %s165
      %s168 = sphi 0, %s167
      %s182 = sphi 0, %s168
      %s186 = sphi 0, %s186
      %s188 = sphi 0, %s186
      %s189 = sphi 0, %s188
      %s203 = sphi 0, %s189
      %s207 = sphi 0, %s207
      %s209 = sphi 0, %s207
      %s210 = sphi 0, %s209
      %s224 = sphi 0, %s210
      %s228 = sphi 0, %s228
      %s230 = sphi 0, %s228
      %s231 = sphi 0, %s230
      %s245 = sphi 0, %s231
      %s249 = sphi 0, %s249
      %s251 = sphi 0, %s249
      %s252 = sphi 0, %s251
      %s266 = sphi 0, %s252
      %s272 = sphi 0, %s274
      %s275 = sphi 0, %s272
      %s276 = sphi 0, %s275
      %s292 = sphi 0, %s276
    $region4: #{tpu_custom_call.1} parent=1 // loop_header_branch
      %29 = sbr.rel (%p27) target = $region8
    $region5: #{tpu_custom_call.1} parent=1 // loop_body
      %s31 = ssub.s32 %s26, 1
      %s32 = ssub.s32 %s26, 2
      %s33 = sadd.s32 %s26, 1
      %s34 = ssub.s32 %s26, %s33
      %p35 = scmp.eq.s32.totalorder %s34, 0
      %s37 = sadd.s32 %s36, 1
      %s38 = scalar_select %p35, %s36, %s37
      %p41 = pneg %p35
      %p42 = scmp.eq.s32.totalorder %s26, 1
      %p43 = por %p41, %p42
      %p44 = scmp.ne.s32.totalorder %s36, %s39
      %p45 = scmp.eq.s32.totalorder %s26, 0
      %p46 = por %p44, %p45
      %p47 = scmp.ne.s32.totalorder %s36, %s39
      %p48 = scmp.eq.s32.totalorder %s31, 1
      %p49 = por %p47, %p48
      %p50 = scmp.ne.s32.totalorder %s39, %s40
      %p51 = scmp.eq.s32.totalorder %s31, 0
      %p52 = por %p50, %p51
      %p53 = scmp.ne.s32.totalorder %s39, %s40
      %p54 = scmp.eq.s32.totalorder %s32, 1
      %p55 = por %p53, %p54
      %p57 = scmp.ne.s32.totalorder %s40, %s56
      %p58 = scmp.eq.s32.totalorder %s32, 0
      %p59 = por %p57, %p58
      %s61 = sadd.s32 %s60, 1
      %p64 = scmp.eq.s32.totalorder %s26, 1
      %p65 = scmp.ne.s32.totalorder %s60, %s62
      %p66 = scmp.eq.s32.totalorder %s26, 0
      %p67 = por %p65, %p66
      %p68 = scmp.ne.s32.totalorder %s60, %s62
      %p69 = scmp.eq.s32.totalorder %s31, 1
      %p70 = por %p68, %p69
      %p71 = scmp.ne.s32.totalorder %s62, %s63
      %p72 = scmp.eq.s32.totalorder %s31, 0
      %p73 = por %p71, %p72
      %p74 = scmp.ne.s32.totalorder %s62, %s63
      %p75 = scmp.eq.s32.totalorder %s32, 1
      %p76 = por %p74, %p75
      %p78 = scmp.ne.s32.totalorder %s63, %s77
      %p79 = scmp.eq.s32.totalorder %s32, 0
      %p80 = por %p78, %p79
      %s82 = sadd.s32 %s81, 1
      %p85 = scmp.eq.s32.totalorder %s26, 1
      %p86 = scmp.ne.s32.totalorder %s81, %s83
      %p87 = scmp.eq.s32.totalorder %s26, 0
      %p88 = por %p86, %p87
      %p89 = scmp.ne.s32.totalorder %s81, %s83
      %p90 = scmp.eq.s32.totalorder %s31, 1
      %p91 = por %p89, %p90
      %p92 = scmp.ne.s32.totalorder %s83, %s84
      %p93 = scmp.eq.s32.totalorder %s31, 0
      %p94 = por %p92, %p93
      %p95 = scmp.ne.s32.totalorder %s83, %s84
      %p96 = scmp.eq.s32.totalorder %s32, 1
      %p97 = por %p95, %p96
      %p99 = scmp.ne.s32.totalorder %s84, %s98
      %p100 = scmp.eq.s32.totalorder %s32, 0
      %p101 = por %p99, %p100
      %s103 = sadd.s32 %s102, 1
      %p106 = scmp.eq.s32.totalorder %s26, 1
      %p107 = scmp.ne.s32.totalorder %s102, %s104
      %p108 = scmp.eq.s32.totalorder %s26, 0
      %p109 = por %p107, %p108
      %p110 = scmp.ne.s32.totalorder %s102, %s104
      %p111 = scmp.eq.s32.totalorder %s31, 1
      %p112 = por %p110, %p111
      %p113 = scmp.ne.s32.totalorder %s104, %s105
      %p114 = scmp.eq.s32.totalorder %s31, 0
      %p115 = por %p113, %p114
      %p116 = scmp.ne.s32.totalorder %s104, %s105
      %p117 = scmp.eq.s32.totalorder %s32, 1
      %p118 = por %p116, %p117
      %p120 = scmp.ne.s32.totalorder %s105, %s119
      %p121 = scmp.eq.s32.totalorder %s32, 0
      %p122 = por %p120, %p121
      %s124 = sadd.s32 %s123, 1
      %p127 = scmp.eq.s32.totalorder %s26, 1
      %p128 = scmp.ne.s32.totalorder %s123, %s125
      %p129 = scmp.eq.s32.totalorder %s26, 0
      %p130 = por %p128, %p129
      %p131 = scmp.ne.s32.totalorder %s123, %s125
      %p132 = scmp.eq.s32.totalorder %s31, 1
      %p133 = por %p131, %p132
      %p134 = scmp.ne.s32.totalorder %s125, %s126
      %p135 = scmp.eq.s32.totalorder %s31, 0
      %p136 = por %p134, %p135
      %p137 = scmp.ne.s32.totalorder %s125, %s126
      %p138 = scmp.eq.s32.totalorder %s32, 1
      %p139 = por %p137, %p138
      %p141 = scmp.ne.s32.totalorder %s126, %s140
      %p142 = scmp.eq.s32.totalorder %s32, 0
      %p143 = por %p141, %p142
      %s145 = sadd.s32 %s144, 1
      %p148 = scmp.eq.s32.totalorder %s26, 1
      %p149 = scmp.ne.s32.totalorder %s144, %s146
      %p150 = scmp.eq.s32.totalorder %s26, 0
      %p151 = por %p149, %p150
      %p152 = scmp.ne.s32.totalorder %s144, %s146
      %p153 = scmp.eq.s32.totalorder %s31, 1
      %p154 = por %p152, %p153
      %p155 = scmp.ne.s32.totalorder %s146, %s147
      %p156 = scmp.eq.s32.totalorder %s31, 0
      %p157 = por %p155, %p156
      %p158 = scmp.ne.s32.totalorder %s146, %s147
      %p159 = scmp.eq.s32.totalorder %s32, 1
      %p160 = por %p158, %p159
      %p162 = scmp.ne.s32.totalorder %s147, %s161
      %p163 = scmp.eq.s32.totalorder %s32, 0
      %p164 = por %p162, %p163
      %s166 = sadd.s32 %s165, 1
      %p169 = scmp.eq.s32.totalorder %s26, 1
      %p170 = scmp.ne.s32.totalorder %s165, %s167
      %p171 = scmp.eq.s32.totalorder %s26, 0
      %p172 = por %p170, %p171
      %p173 = scmp.ne.s32.totalorder %s165, %s167
      %p174 = scmp.eq.s32.totalorder %s31, 1
      %p175 = por %p173, %p174
      %p176 = scmp.ne.s32.totalorder %s167, %s168
      %p177 = scmp.eq.s32.totalorder %s31, 0
      %p178 = por %p176, %p177
      %p179 = scmp.ne.s32.totalorder %s167, %s168
      %p180 = scmp.eq.s32.totalorder %s32, 1
      %p181 = por %p179, %p180
      %p183 = scmp.ne.s32.totalorder %s168, %s182
      %p184 = scmp.eq.s32.totalorder %s32, 0
      %p185 = por %p183, %p184
      %s187 = sadd.s32 %s186, 1
      %p190 = scmp.eq.s32.totalorder %s26, 1
      %p191 = scmp.ne.s32.totalorder %s186, %s188
      %p192 = scmp.eq.s32.totalorder %s26, 0
      %p193 = por %p191, %p192
      %p194 = scmp.ne.s32.totalorder %s186, %s188
      %p195 = scmp.eq.s32.totalorder %s31, 1
      %p196 = por %p194, %p195
      %p197 = scmp.ne.s32.totalorder %s188, %s189
      %p198 = scmp.eq.s32.totalorder %s31, 0
      %p199 = por %p197, %p198
      %p200 = scmp.ne.s32.totalorder %s188, %s189
      %p201 = scmp.eq.s32.totalorder %s32, 1
      %p202 = por %p200, %p201
      %p204 = scmp.ne.s32.totalorder %s189, %s203
      %p205 = scmp.eq.s32.totalorder %s32, 0
      %p206 = por %p204, %p205
      %s208 = sadd.s32 %s207, 1
      %p211 = scmp.eq.s32.totalorder %s26, 1
      %p212 = scmp.ne.s32.totalorder %s207, %s209
      %p213 = scmp.eq.s32.totalorder %s26, 0
      %p214 = por %p212, %p213
      %p215 = scmp.ne.s32.totalorder %s207, %s209
      %p216 = scmp.eq.s32.totalorder %s31, 1
      %p217 = por %p215, %p216
      %p218 = scmp.ne.s32.totalorder %s209, %s210
      %p219 = scmp.eq.s32.totalorder %s31, 0
      %p220 = por %p218, %p219
      %p221 = scmp.ne.s32.totalorder %s209, %s210
      %p222 = scmp.eq.s32.totalorder %s32, 1
      %p223 = por %p221, %p222
      %p225 = scmp.ne.s32.totalorder %s210, %s224
      %p226 = scmp.eq.s32.totalorder %s32, 0
      %p227 = por %p225, %p226
      %s229 = sadd.s32 %s228, 1
      %p232 = scmp.eq.s32.totalorder %s26, 1
      %p233 = scmp.ne.s32.totalorder %s228, %s230
      %p234 = scmp.eq.s32.totalorder %s26, 0
      %p235 = por %p233, %p234
      %p236 = scmp.ne.s32.totalorder %s228, %s230
      %p237 = scmp.eq.s32.totalorder %s31, 1
      %p238 = por %p236, %p237
      %p239 = scmp.ne.s32.totalorder %s230, %s231
      %p240 = scmp.eq.s32.totalorder %s31, 0
      %p241 = por %p239, %p240
      %p242 = scmp.ne.s32.totalorder %s230, %s231
      %p243 = scmp.eq.s32.totalorder %s32, 1
      %p244 = por %p242, %p243
      %p246 = scmp.ne.s32.totalorder %s231, %s245
      %p247 = scmp.eq.s32.totalorder %s32, 0
      %p248 = por %p246, %p247
      %s250 = sadd.s32 %s249, 1
      %p253 = scmp.eq.s32.totalorder %s26, 1
      %p254 = scmp.ne.s32.totalorder %s249, %s251
      %p255 = scmp.eq.s32.totalorder %s26, 0
      %p256 = por %p254, %p255
      %p257 = scmp.ne.s32.totalorder %s249, %s251
      %p258 = scmp.eq.s32.totalorder %s31, 1
      %p259 = por %p257, %p258
      %p260 = scmp.ne.s32.totalorder %s251, %s252
      %p261 = scmp.eq.s32.totalorder %s31, 0
      %p262 = por %p260, %p261
      %p263 = scmp.ne.s32.totalorder %s251, %s252
      %p264 = scmp.eq.s32.totalorder %s32, 1
      %p265 = por %p263, %p264
      %p267 = scmp.ne.s32.totalorder %s252, %s266
      %p268 = scmp.eq.s32.totalorder %s32, 0
      %p269 = por %p267, %p268
      %s270 = ssub.s32 %s26, %s33
      %p271 = scmp.eq.s32.totalorder %s270, 0
      %s273 = sadd.s32 %s272, 1
      %s274 = scalar_select %p271, %s272, %s273
      %p277 = pneg %p271
      %p278 = scmp.eq.s32.totalorder %s26, 1
      %p279 = por %p277, %p278
      %p280 = scmp.ne.s32.totalorder %s272, %s275
      %p281 = scmp.eq.s32.totalorder %s26, 0
      %p282 = por %p280, %p281
      %p283 = scmp.ne.s32.totalorder %s272, %s275
      %p284 = scmp.eq.s32.totalorder %s31, 1
      %p285 = por %p283, %p284
      %p286 = scmp.ne.s32.totalorder %s275, %s276
      %p287 = scmp.eq.s32.totalorder %s31, 0
      %p288 = por %p286, %p287
      %p289 = scmp.ne.s32.totalorder %s275, %s276
      %p290 = scmp.eq.s32.totalorder %s32, 1
      %p291 = por %p289, %p290
      %p293 = scmp.ne.s32.totalorder %s276, %s292
      %p294 = scmp.eq.s32.totalorder %s32, 0
      %p295 = por %p293, %p294
      %p296 = scmp.le.s32.totalorder 1, %s26
      %p297 = scmp.lt.s32.totalorder %s26, 3
      %p298 = pnand %p296, %p297
      %p299 = pneg %p298
      // Predicated region
      $region9: #{tpu_custom_call.1} parent=5 // pred_check
        _
      $region10: #{tpu_custom_call.1} parent=5 // pred_check_branch
        %301 = sbr.rel (%p298) target = $region12
      $region11: #{tpu_custom_call.1} parent=5 // pred_region
        %s302 = ssub.s32 %s26, 1
        // Predicated region
        $region13: #{tpu_custom_call.1} parent=11 // pred_check
          %p303 = pneg %p73
        $region14: #{tpu_custom_call.1} parent=11 // pred_check_branch
          %305 = sbr.rel (%p303) target = $region16
        $region15: #{tpu_custom_call.1} parent=11 // pred_region
          %s307 = ssub.s32 1024, 1024
          %308 = vsyncadd [#allocation6], %s307
          %s309 = sshll.u32 [#allocation5], 4
          %s310 = int_to_ptr.vmem [resolvable:$true] %s309
          %315 = dma.hbm_to_vmem [thread:$0]  %s1, 1024, %s310, [#allocation6], 64, 64, 4
        $region16: #{tpu_custom_call.1} parent=11 // pred_fallthru
          _
        // Predicated region
        $region17: #{tpu_custom_call.1} parent=11 // pred_check
          %p316 = pneg %p94
        $region18: #{tpu_custom_call.1} parent=11 // pred_check_branch
          %318 = sbr.rel (%p316) target = $region20
        $region19: #{tpu_custom_call.1} parent=11 // pred_region
          %s320 = ssub.s32 1024, 1024
          %321 = vsyncadd [#allocation6], %s320
          %s322 = sshll.u32 [#allocation7], 4
          %s323 = int_to_ptr.vmem [resolvable:$true] %s322
          %328 = dma.hbm_to_vmem [thread:$0]  %s2, 1024, %s323, [#allocation6], 64, 64, 4
        $region20: #{tpu_custom_call.1} parent=11 // pred_fallthru
          _
        // Predicated region
        $region21: #{tpu_custom_call.1} parent=11 // pred_check
          %p329 = pneg %p115
        $region22: #{tpu_custom_call.1} parent=11 // pred_check_branch
          %331 = sbr.rel (%p329) target = $region24
        $region23: #{tpu_custom_call.1} parent=11 // pred_region
          %s333 = ssub.s32 1024, 1024
          %334 = vsyncadd [#allocation9], %s333
          %s335 = sshll.u32 [#allocation8], 4
          %s336 = int_to_ptr.vmem [resolvable:$true] %s335
          %341 = dma.hbm_to_vmem [thread:$0]  %s3, 1024, %s336, [#allocation9], 64, 64, 4
        $region24: #{tpu_custom_call.1} parent=11 // pred_fallthru
          _
        // Predicated region
        $region25: #{tpu_custom_call.1} parent=11 // pred_check
          %p342 = pneg %p136
        $region26: #{tpu_custom_call.1} parent=11 // pred_check_branch
          %344 = sbr.rel (%p342) target = $region28
        $region27: #{tpu_custom_call.1} parent=11 // pred_region
          %s346 = ssub.s32 1024, 1024
          %347 = vsyncadd [#allocation9], %s346
          %s348 = sshll.u32 [#allocation10], 4
          %s349 = int_to_ptr.vmem [resolvable:$true] %s348
          %354 = dma.hbm_to_vmem [thread:$0]  %s4, 1024, %s349, [#allocation9], 64, 64, 4
        $region28: #{tpu_custom_call.1} parent=11 // pred_fallthru
          _
        // Predicated region
        $region29: #{tpu_custom_call.1} parent=11 // pred_check
          %p355 = pneg %p157
        $region30: #{tpu_custom_call.1} parent=11 // pred_check_branch
          %357 = sbr.rel (%p355) target = $region32
        $region31: #{tpu_custom_call.1} parent=11 // pred_region
          %s359 = ssub.s32 1024, 1024
          %360 = vsyncadd [#allocation12], %s359
          %s361 = sshll.u32 [#allocation11], 4
          %s362 = int_to_ptr.vmem [resolvable:$true] %s361
          %367 = dma.hbm_to_vmem [thread:$0]  %s5, 1024, %s362, [#allocation12], 64, 64, 4
        $region32: #{tpu_custom_call.1} parent=11 // pred_fallthru
          _
        // Predicated region
        $region33: #{tpu_custom_call.1} parent=11 // pred_check
          %p368 = pneg %p178
        $region34: #{tpu_custom_call.1} parent=11 // pred_check_branch
          %370 = sbr.rel (%p368) target = $region36
        $region35: #{tpu_custom_call.1} parent=11 // pred_region
          _
        $region36: #{tpu_custom_call.1} parent=11 // pred_fallthru
          _
        // Predicated region
        $region37: #{tpu_custom_call.1} parent=11 // pred_check
          %p371 = pneg %p199
        $region38: #{tpu_custom_call.1} parent=11 // pred_check_branch
          %373 = sbr.rel (%p371) target = $region40
        $region39: #{tpu_custom_call.1} parent=11 // pred_region
          _
        $region40: #{tpu_custom_call.1} parent=11 // pred_fallthru
          _
        // Predicated region
        $region41: #{tpu_custom_call.1} parent=11 // pred_check
          %p374 = pneg %p220
        $region42: #{tpu_custom_call.1} parent=11 // pred_check_branch
          %376 = sbr.rel (%p374) target = $region44
        $region43: #{tpu_custom_call.1} parent=11 // pred_region
          _
        $region44: #{tpu_custom_call.1} parent=11 // pred_fallthru
          _
        // Predicated region
        $region45: #{tpu_custom_call.1} parent=11 // pred_check
          %p377 = pneg %p241
        $region46: #{tpu_custom_call.1} parent=11 // pred_check_branch
          %379 = sbr.rel (%p377) target = $region48
        $region47: #{tpu_custom_call.1} parent=11 // pred_region
          _
        $region48: #{tpu_custom_call.1} parent=11 // pred_fallthru
          _
        // Predicated region
        $region49: #{tpu_custom_call.1} parent=11 // pred_check
          %p380 = pneg %p262
        $region50: #{tpu_custom_call.1} parent=11 // pred_check_branch
          %382 = sbr.rel (%p380) target = $region52
        $region51: #{tpu_custom_call.1} parent=11 // pred_region
          _
        $region52: #{tpu_custom_call.1} parent=11 // pred_fallthru
          _
      $region12: #{tpu_custom_call.1} parent=5 // pred_fallthru
        _
      %p383 = scmp.lt.s32.totalorder %s26, 2
      // Predicated region
      $region53: #{tpu_custom_call.1} parent=5 // pred_check
        %p384 = pneg %p383
      $region54: #{tpu_custom_call.1} parent=5 // pred_check_branch
        %386 = sbr.rel (%p384) target = $region56
      $region55: #{tpu_custom_call.1} parent=5 // pred_region
        // Predicated region
        $region57: #{tpu_custom_call.1} parent=55 // pred_check
          %p387 = pneg %p46
        $region58: #{tpu_custom_call.1} parent=55 // pred_check_branch
          %389 = sbr.rel (%p387) target = $region60
        $region59: #{tpu_custom_call.1} parent=55 // pred_region
          %s390 = sand.u32 %s36, 1
          %s391 = scalar_lea.sflag [#allocation3], %s390
          %s392 = sand.u32 %s36, 1
          %s393 = smul.addr %s392, 16
          %s394 = scalar_lea.vmem [#allocation2], %s393
          %s395 = smul.u32 4, %s26
          %s397 = ssub.s32 256, 256
          %398 = vsyncadd %s391, %s397
          %s399 = smul.addr %s395, 64
          %s400 = scalar_lea.hbm %s0, %s399
          %s401 = sshll.u32 %s394, 4
          %s402 = int_to_ptr.vmem [resolvable:$true] %s401
          %407 = dma.hbm_to_vmem [thread:$0]  %s400, 256, %s402, %s391, 64, 64, 4
        $region60: #{tpu_custom_call.1} parent=55 // pred_fallthru
          _
      $region56: #{tpu_custom_call.1} parent=5 // pred_fallthru
        _
      %p408 = scmp.le.s32.totalorder 1, %s26
      %p409 = scmp.lt.s32.totalorder %s26, 3
      %p410 = pnand %p408, %p409
      %p411 = pneg %p410
      // Predicated region
      $region61: #{tpu_custom_call.1} parent=5 // pred_check
        _
      $region62: #{tpu_custom_call.1} parent=5 // pred_check_branch
        %413 = sbr.rel (%p410) target = $region64
      $region63: #{tpu_custom_call.1} parent=5 // pred_region
        %s414 = ssub.s32 %s26, 1
        %s415 = sand.u32 %s39, 1
        %s416 = scalar_lea.sflag [#allocation3], %s415
        %s417 = sand.u32 %s39, 1
        %s418 = smul.addr %s417, 16
        %s419 = scalar_lea.vmem [#allocation2], %s418
        // Predicated region
        $region65: #{tpu_custom_call.1} parent=63 // pred_check
          %p420 = pneg %p52
        $region66: #{tpu_custom_call.1} parent=63 // pred_check_branch
          %422 = sbr.rel (%p420) target = $region68
        $region67: #{tpu_custom_call.1} parent=63 // pred_region
          %423 = dma.done %s416, 256
        $region68: #{tpu_custom_call.1} parent=63 // pred_fallthru
          _
        // Predicated region
        $region69: #{tpu_custom_call.1} parent=63 // pred_check
          %p424 = pneg %p73
        $region70: #{tpu_custom_call.1} parent=63 // pred_check_branch
          %426 = sbr.rel (%p424) target = $region72
        $region71: #{tpu_custom_call.1} parent=63 // pred_region
          %427 = dma.done [#allocation6], 1024
        $region72: #{tpu_custom_call.1} parent=63 // pred_fallthru
          _
        // Predicated region
        $region73: #{tpu_custom_call.1} parent=63 // pred_check
          %p428 = pneg %p94
        $region74: #{tpu_custom_call.1} parent=63 // pred_check_branch
          %430 = sbr.rel (%p428) target = $region76
        $region75: #{tpu_custom_call.1} parent=63 // pred_region
          %431 = dma.done [#allocation6], 1024
        $region76: #{tpu_custom_call.1} parent=63 // pred_fallthru
          _
        // Predicated region
        $region77: #{tpu_custom_call.1} parent=63 // pred_check
          %p432 = pneg %p115
        $region78: #{tpu_custom_call.1} parent=63 // pred_check_branch
          %434 = sbr.rel (%p432) target = $region80
        $region79: #{tpu_custom_call.1} parent=63 // pred_region
          %435 = dma.done [#allocation9], 1024
        $region80: #{tpu_custom_call.1} parent=63 // pred_fallthru
          _
        // Predicated region
        $region81: #{tpu_custom_call.1} parent=63 // pred_check
          %p436 = pneg %p136
        $region82: #{tpu_custom_call.1} parent=63 // pred_check_branch
          %438 = sbr.rel (%p436) target = $region84
        $region83: #{tpu_custom_call.1} parent=63 // pred_region
          %439 = dma.done [#allocation9], 1024
        $region84: #{tpu_custom_call.1} parent=63 // pred_fallthru
          _
        // Predicated region
        $region85: #{tpu_custom_call.1} parent=63 // pred_check
          %p440 = pneg %p157
        $region86: #{tpu_custom_call.1} parent=63 // pred_check_branch
          %442 = sbr.rel (%p440) target = $region88
        $region87: #{tpu_custom_call.1} parent=63 // pred_region
          %443 = dma.done [#allocation12], 1024
        $region88: #{tpu_custom_call.1} parent=63 // pred_fallthru
          _
        %s444 = sand.u32 %s39, 1
        %s445 = scalar_lea.sflag [#allocation3], %s444
        %s446 = sand.u32 %s39, 1
        %s447 = smul.addr %s446, 16
        %s448 = scalar_lea.vmem [#allocation2], %s447
        %p449 = pneg %p52
        %p450 = pneg %p49
        %p451 = pneg %p73
        %p452 = pneg %p70
        %p453 = pneg %p94
        %p454 = pneg %p91
        %p455 = pneg %p115
        %p456 = pneg %p112
        %p457 = pneg %p136
        %p458 = pneg %p133
        %p459 = pneg %p157
        %p460 = pneg %p154
        %p461 = pneg %p178
        %p462 = pneg %p175
        %p463 = pneg %p199
        %p464 = pneg %p196
        %p465 = pneg %p220
        %p466 = pneg %p217
        %p467 = pneg %p241
        %p468 = pneg %p238
        %p469 = pneg %p262
        %p470 = pneg %p259
        %p471 = pneg %p288
        %p472 = pneg %p285
        %s473 = sand.u32 %s275, 1
        %s474 = scalar_lea.sflag [#allocation4], %s473
        %s475 = sand.u32 %s275, 1
        %s476 = smul.addr %s475, 16
        %s477 = scalar_lea.vmem [#allocation13], %s476
        %s478 = smul.u32 4, %s31
        %s479 = smul.u32 4, %s31
        %v481 = vld [vmem:[%s419] sm:$0xf]
        %v482 = vld [vmem:[%s419 + $0x4] sm:$0xf]
        %v483 = vld [vmem:[%s419 + $0x8] sm:$0xf]
        %v484 = vld [vmem:[%s419 + $0xc] sm:$0xf]
        %v485 = vld [vmem:[#allocation5] sm:$0xf]
        %v486 = vld [vmem:[#allocation5 + $0x4] sm:$0xf]
        %v487 = vld [vmem:[#allocation5 + $0x8] sm:$0xf]
        %v488 = vld [vmem:[#allocation5 + $0xc] sm:$0xf]
        %v489 = vld [vmem:[#allocation5 + $0x10] sm:$0xf]
        %v490 = vld [vmem:[#allocation5 + $0x14] sm:$0xf]
        %v491 = vld [vmem:[#allocation5 + $0x18] sm:$0xf]
        %v492 = vld [vmem:[#allocation5 + $0x1c] sm:$0xf]
        %v493 = vld [vmem:[#allocation5 + $0x20] sm:$0xf]
        %v494 = vld [vmem:[#allocation5 + $0x24] sm:$0xf]
        %v495 = vld [vmem:[#allocation5 + $0x28] sm:$0xf]
        %v496 = vld [vmem:[#allocation5 + $0x2c] sm:$0xf]
        %v497 = vld [vmem:[#allocation5 + $0x30] sm:$0xf]
        %v498 = vld [vmem:[#allocation5 + $0x34] sm:$0xf]
        %v499 = vld [vmem:[#allocation5 + $0x38] sm:$0xf]
        %v500 = vld [vmem:[#allocation5 + $0x3c] sm:$0xf]
        %v501 = vld [vmem:[%s6] sm:$0x1]
        %v503 = vlaneseq
        %v504 = vshrl.u32 %v503, 7
        %v505 = vsub.s32 0, %v504
        %v506 = vrot.slane %v501, %v505
        %v512 = vunpack.c.l.b16 %v481
        %v513 = vunpack.c.l.b16 %v482
        %v514 = vunpack.c.l.b16 %v483
        %v515 = vunpack.c.l.b16 %v484
        %v516 = vpack.c.b16 %v513, %v512
        %v517 = vpack.c.b16 %v515, %v514
        %v536 = vunpack.c.l.b16 %v485
        %v537 = vunpack.c.l.b16 %v486
        %v538 = vunpack.c.l.b16 %v487
        %v539 = vunpack.c.l.b16 %v488
        %v540 = vunpack.c.l.b16 %v489
        %v541 = vunpack.c.l.b16 %v490
        %v542 = vunpack.c.l.b16 %v491
        %v543 = vunpack.c.l.b16 %v492
        %v544 = vunpack.c.l.b16 %v493
        %v545 = vunpack.c.l.b16 %v494
        %v546 = vunpack.c.l.b16 %v495
        %v547 = vunpack.c.l.b16 %v496
        %v548 = vunpack.c.l.b16 %v497
        %v549 = vunpack.c.l.b16 %v498
        %v550 = vunpack.c.l.b16 %v499
        %v551 = vunpack.c.l.b16 %v500
        %v552 = vpack.c.b16 %v537, %v536
        %v553 = vpack.c.b16 %v539, %v538
        %v554 = vpack.c.b16 %v541, %v540
        %v555 = vpack.c.b16 %v543, %v542
        %v556 = vpack.c.b16 %v545, %v544
        %v557 = vpack.c.b16 %v547, %v546
        %v558 = vpack.c.b16 %v549, %v548
        %v559 = vpack.c.b16 %v551, %v550
        %568 = vmatprep.subr.bf16.mxu0 0
        %569 = vmatpush1.bf16.msra.mxu0 %v552
        %570 = vmatprep.subr.bf16.mxu0 0
        %571 = vmatpush1.bf16.msra.mxu0 %v553
        %572 = vmatprep.subr.bf16.mxu0 0
        %573 = vmatpush1.bf16.msra.mxu0 %v554
        %574 = vmatprep.subr.bf16.mxu0 0
        %575 = vmatpush1.bf16.msra.mxu0 %v555
        %576 = vmatprep.subr.bf16.mxu0 0
        %577 = vmatpush1.bf16.msra.mxu0 %v556
        %578 = vmatprep.subr.bf16.mxu0 0
        %579 = vmatpush1.bf16.msra.mxu0 %v557
        %580 = vmatprep.subr.bf16.mxu0 0
        %581 = vmatpush1.bf16.msra.mxu0 %v558
        %582 = vmatprep.subr.bf16.mxu0 0
        %583 = vmatpush1.bf16.msra.mxu0 %v559
        %584 = vmatprep.subr.bf16.mxu0 0
        %585 = vmatpush1.bf16.msra.mxu0 0
        %586 = vmatprep.subr.bf16.mxu0 0
        %587 = vmatpush1.bf16.msra.mxu0 0
        %588 = vmatprep.subr.bf16.mxu0 0
        %589 = vmatpush1.bf16.msra.mxu0 0
        %590 = vmatprep.subr.bf16.mxu0 0
        %591 = vmatpush1.bf16.msra.mxu0 0
        %592 = vmatprep.subr.bf16.mxu0 0
        %593 = vmatpush1.bf16.msra.mxu0 0
        %594 = vmatprep.subr.bf16.mxu0 0
        %595 = vmatpush1.bf16.msra.mxu0 0
        %596 = vmatprep.subr.bf16.mxu0 0
        %597 = vmatpush1.bf16.msra.mxu0 0
        %598 = vmatprep.subr.bf16.mxu0 0
        %599 = vmatpush1.bf16.msra.mxu0 0
        %600 = vmatprep.mubr.bf16.mxu0 0
        %601 = vmatmul.mubr.bf16.gmra.mrb[0].mxu0 %v516
        %v602 = vpop.f32.mrb[0].mxu0
        %v603 = vadd.f32 %v506, %v602
        %v604 = vpop.f32.mrb[0].mxu0
        %v605 = vpop.f32.mrb[0].mxu0
        %v606 = vadd.f32 %v506, %v605
        %v607 = vpop.f32.mrb[0].mxu0
        %608 = vmatprep.mubr.bf16.mxu0 0
        %609 = vmatmul.mubr.bf16.gmra.mrb[0].mxu0 %v517
        %v610 = vpop.f32.mrb[0].mxu0
        %v611 = vadd.f32 %v506, %v610
        %v612 = vpop.f32.mrb[0].mxu0
        %v613 = vpop.f32.mrb[0].mxu0
        %v614 = vadd.f32 %v506, %v613
        %v615 = vpop.f32.mrb[0].mxu0
        %616 = vdwg.mxu0
        %v617 = vmul.f32 %v603, 0.2
        %v618 = vmul.f32 %v606, 0.2
        %v619 = vmul.f32 %v611, 0.2
        %v620 = vmul.f32 %v614, 0.2
        %v621 = vmax.f32 %v603, %v617
        %v622 = vmax.f32 %v606, %v618
        %v623 = vmax.f32 %v611, %v619
        %v624 = vmax.f32 %v614, %v620
        %v625 = vpack.c.bf16 %v622, %v621
        %v626 = vpack.c.bf16 %v624, %v623
        %v627 = vld [vmem:[#allocation7] sm:$0xf]
        %v628 = vld [vmem:[#allocation7 + $0x4] sm:$0xf]
        %v629 = vld [vmem:[#allocation7 + $0x8] sm:$0xf]
        %v630 = vld [vmem:[#allocation7 + $0xc] sm:$0xf]
        %v631 = vld [vmem:[#allocation7 + $0x10] sm:$0xf]
        %v632 = vld [vmem:[#allocation7 + $0x14] sm:$0xf]
        %v633 = vld [vmem:[#allocation7 + $0x18] sm:$0xf]
        %v634 = vld [vmem:[#allocation7 + $0x1c] sm:$0xf]
        %v635 = vld [vmem:[#allocation7 + $0x20] sm:$0xf]
        %v636 = vld [vmem:[#allocation7 + $0x24] sm:$0xf]
        %v637 = vld [vmem:[#allocation7 + $0x28] sm:$0xf]
        %v638 = vld [vmem:[#allocation7 + $0x2c] sm:$0xf]
        %v639 = vld [vmem:[#allocation7 + $0x30] sm:$0xf]
        %v640 = vld [vmem:[#allocation7 + $0x34] sm:$0xf]
        %v641 = vld [vmem:[#allocation7 + $0x38] sm:$0xf]
        %v642 = vld [vmem:[#allocation7 + $0x3c] sm:$0xf]
        %v643 = vld [vmem:[%s7] sm:$0x1]
        %v645 = vlaneseq
        %v646 = vshrl.u32 %v645, 7
        %v647 = vsub.s32 0, %v646
        %v648 = vrot.slane %v643, %v647
        %v666 = vunpack.c.l.b16 %v627
        %v667 = vunpack.c.l.b16 %v628
        %v668 = vunpack.c.l.b16 %v629
        %v669 = vunpack.c.l.b16 %v630
        %v670 = vunpack.c.l.b16 %v631
        %v671 = vunpack.c.l.b16 %v632
        %v672 = vunpack.c.l.b16 %v633
        %v673 = vunpack.c.l.b16 %v634
        %v674 = vunpack.c.l.b16 %v635
        %v675 = vunpack.c.l.b16 %v636
        %v676 = vunpack.c.l.b16 %v637
        %v677 = vunpack.c.l.b16 %v638
        %v678 = vunpack.c.l.b16 %v639
        %v679 = vunpack.c.l.b16 %v640
        %v680 = vunpack.c.l.b16 %v641
        %v681 = vunpack.c.l.b16 %v642
        %v682 = vpack.c.b16 %v667, %v666
        %v683 = vpack.c.b16 %v669, %v668
        %v684 = vpack.c.b16 %v671, %v670
        %v685 = vpack.c.b16 %v673, %v672
        %v686 = vpack.c.b16 %v675, %v674
        %v687 = vpack.c.b16 %v677, %v676
        %v688 = vpack.c.b16 %v679, %v678
        %v689 = vpack.c.b16 %v681, %v680
        %698 = vmatprep.subr.bf16.mxu0 0
        %699 = vmatpush1.bf16.msra.mxu0 %v682
        %700 = vmatprep.subr.bf16.mxu0 0
        %701 = vmatpush1.bf16.msra.mxu0 %v683
        %702 = vmatprep.subr.bf16.mxu0 0
        %703 = vmatpush1.bf16.msra.mxu0 %v684
        %704 = vmatprep.subr.bf16.mxu0 0
        %705 = vmatpush1.bf16.msra.mxu0 %v685
        %706 = vmatprep.subr.bf16.mxu0 0
        %707 = vmatpush1.bf16.msra.mxu0 %v686
        %708 = vmatprep.subr.bf16.mxu0 0
        %709 = vmatpush1.bf16.msra.mxu0 %v687
        %710 = vmatprep.subr.bf16.mxu0 0
        %711 = vmatpush1.bf16.msra.mxu0 %v688
        %712 = vmatprep.subr.bf16.mxu0 0
        %713 = vmatpush1.bf16.msra.mxu0 %v689
        %714 = vmatprep.subr.bf16.mxu0 0
        %715 = vmatpush1.bf16.msra.mxu0 0
        %716 = vmatprep.subr.bf16.mxu0 0
        %717 = vmatpush1.bf16.msra.mxu0 0
        %718 = vmatprep.subr.bf16.mxu0 0
        %719 = vmatpush1.bf16.msra.mxu0 0
        %720 = vmatprep.subr.bf16.mxu0 0
        %721 = vmatpush1.bf16.msra.mxu0 0
        %722 = vmatprep.subr.bf16.mxu0 0
        %723 = vmatpush1.bf16.msra.mxu0 0
        %724 = vmatprep.subr.bf16.mxu0 0
        %725 = vmatpush1.bf16.msra.mxu0 0
        %726 = vmatprep.subr.bf16.mxu0 0
        %727 = vmatpush1.bf16.msra.mxu0 0
        %728 = vmatprep.subr.bf16.mxu0 0
        %729 = vmatpush1.bf16.msra.mxu0 0
        %730 = vmatprep.mubr.bf16.mxu0 0
        %731 = vmatmul.mubr.bf16.gmra.mrb[0].mxu0 %v625
        %v732 = vpop.f32.mrb[0].mxu0
        %v733 = vadd.f32 %v648, %v732
        %v734 = vpop.f32.mrb[0].mxu0
        %v735 = vpop.f32.mrb[0].mxu0
        %v736 = vadd.f32 %v648, %v735
        %v737 = vpop.f32.mrb[0].mxu0
        %738 = vmatprep.mubr.bf16.mxu0 0
        %739 = vmatmul.mubr.bf16.gmra.mrb[0].mxu0 %v626
        %v740 = vpop.f32.mrb[0].mxu0
        %v741 = vadd.f32 %v648, %v740
        %v742 = vpop.f32.mrb[0].mxu0
        %v743 = vpop.f32.mrb[0].mxu0
        %v744 = vadd.f32 %v648, %v743
        %v745 = vpop.f32.mrb[0].mxu0
        %746 = vdwg.mxu0
        %v747 = vmul.f32 %v733, 0.2
        %v748 = vmul.f32 %v736, 0.2
        %v749 = vmul.f32 %v741, 0.2
        %v750 = vmul.f32 %v744, 0.2
        %v751 = vmax.f32 %v733, %v747
        %v752 = vmax.f32 %v736, %v748
        %v753 = vmax.f32 %v741, %v749
        %v754 = vmax.f32 %v744, %v750
        %v755 = vpack.c.bf16 %v752, %v751
        %v756 = vpack.c.bf16 %v754, %v753
        %v757 = vld [vmem:[#allocation8] sm:$0xf]
        %v758 = vld [vmem:[#allocation8 + $0x4] sm:$0xf]
        %v759 = vld [vmem:[#allocation8 + $0x8] sm:$0xf]
        %v760 = vld [vmem:[#allocation8 + $0xc] sm:$0xf]
        %v761 = vld [vmem:[#allocation8 + $0x10] sm:$0xf]
        %v762 = vld [vmem:[#allocation8 + $0x14] sm:$0xf]
        %v763 = vld [vmem:[#allocation8 + $0x18] sm:$0xf]
        %v764 = vld [vmem:[#allocation8 + $0x1c] sm:$0xf]
        %v765 = vld [vmem:[#allocation8 + $0x20] sm:$0xf]
        %v766 = vld [vmem:[#allocation8 + $0x24] sm:$0xf]
        %v767 = vld [vmem:[#allocation8 + $0x28] sm:$0xf]
        %v768 = vld [vmem:[#allocation8 + $0x2c] sm:$0xf]
        %v769 = vld [vmem:[#allocation8 + $0x30] sm:$0xf]
        %v770 = vld [vmem:[#allocation8 + $0x34] sm:$0xf]
        %v771 = vld [vmem:[#allocation8 + $0x38] sm:$0xf]
        %v772 = vld [vmem:[#allocation8 + $0x3c] sm:$0xf]
        %v773 = vld [vmem:[%s8] sm:$0x1]
        %v775 = vlaneseq
        %v776 = vshrl.u32 %v775, 7
        %v777 = vsub.s32 0, %v776
        %v778 = vrot.slane %v773, %v777
        %v796 = vunpack.c.l.b16 %v757
        %v797 = vunpack.c.l.b16 %v758
        %v798 = vunpack.c.l.b16 %v759
        %v799 = vunpack.c.l.b16 %v760
        %v800 = vunpack.c.l.b16 %v761
        %v801 = vunpack.c.l.b16 %v762
        %v802 = vunpack.c.l.b16 %v763
        %v803 = vunpack.c.l.b16 %v764
        %v804 = vunpack.c.l.b16 %v765
        %v805 = vunpack.c.l.b16 %v766
        %v806 = vunpack.c.l.b16 %v767
        %v807 = vunpack.c.l.b16 %v768
        %v808 = vunpack.c.l.b16 %v769
        %v809 = vunpack.c.l.b16 %v770
        %v810 = vunpack.c.l.b16 %v771
        %v811 = vunpack.c.l.b16 %v772
        %v812 = vpack.c.b16 %v797, %v796
        %v813 = vpack.c.b16 %v799, %v798
        %v814 = vpack.c.b16 %v801, %v800
        %v815 = vpack.c.b16 %v803, %v802
        %v816 = vpack.c.b16 %v805, %v804
        %v817 = vpack.c.b16 %v807, %v806
        %v818 = vpack.c.b16 %v809, %v808
        %v819 = vpack.c.b16 %v811, %v810
        %828 = vmatprep.subr.bf16.mxu0 0
        %829 = vmatpush1.bf16.msra.mxu0 %v812
        %830 = vmatprep.subr.bf16.mxu0 0
        %831 = vmatpush1.bf16.msra.mxu0 %v813
        %832 = vmatprep.subr.bf16.mxu0 0
        %833 = vmatpush1.bf16.msra.mxu0 %v814
        %834 = vmatprep.subr.bf16.mxu0 0
        %835 = vmatpush1.bf16.msra.mxu0 %v815
        %836 = vmatprep.subr.bf16.mxu0 0
        %837 = vmatpush1.bf16.msra.mxu0 %v816
        %838 = vmatprep.subr.bf16.mxu0 0
        %839 = vmatpush1.bf16.msra.mxu0 %v817
        %840 = vmatprep.subr.bf16.mxu0 0
        %841 = vmatpush1.bf16.msra.mxu0 %v818
        %842 = vmatprep.subr.bf16.mxu0 0
        %843 = vmatpush1.bf16.msra.mxu0 %v819
        %844 = vmatprep.subr.bf16.mxu0 0
        %845 = vmatpush1.bf16.msra.mxu0 0
        %846 = vmatprep.subr.bf16.mxu0 0
        %847 = vmatpush1.bf16.msra.mxu0 0
        %848 = vmatprep.subr.bf16.mxu0 0
        %849 = vmatpush1.bf16.msra.mxu0 0
        %850 = vmatprep.subr.bf16.mxu0 0
        %851 = vmatpush1.bf16.msra.mxu0 0
        %852 = vmatprep.subr.bf16.mxu0 0
        %853 = vmatpush1.bf16.msra.mxu0 0
        %854 = vmatprep.subr.bf16.mxu0 0
        %855 = vmatpush1.bf16.msra.mxu0 0
        %856 = vmatprep.subr.bf16.mxu0 0
        %857 = vmatpush1.bf16.msra.mxu0 0
        %858 = vmatprep.subr.bf16.mxu0 0
        %859 = vmatpush1.bf16.msra.mxu0 0
        %860 = vmatprep.mubr.bf16.mxu0 0
        %861 = vmatmul.mubr.bf16.gmra.mrb[0].mxu0 %v755
        %v862 = vpop.f32.mrb[0].mxu0
        %v863 = vadd.f32 %v778, %v862
        %v864 = vpop.f32.mrb[0].mxu0
        %v865 = vpop.f32.mrb[0].mxu0
        %v866 = vadd.f32 %v778, %v865
        %v867 = vpop.f32.mrb[0].mxu0
        %868 = vmatprep.mubr.bf16.mxu0 0
        %869 = vmatmul.mubr.bf16.gmra.mrb[0].mxu0 %v756
        %v870 = vpop.f32.mrb[0].mxu0
        %v871 = vadd.f32 %v778, %v870
        %v872 = vpop.f32.mrb[0].mxu0
        %v873 = vpop.f32.mrb[0].mxu0
        %v874 = vadd.f32 %v778, %v873
        %v875 = vpop.f32.mrb[0].mxu0
        %876 = vdwg.mxu0
        %v877 = vmul.f32 %v863, 0.2
        %v878 = vmul.f32 %v866, 0.2
        %v879 = vmul.f32 %v871, 0.2
        %v880 = vmul.f32 %v874, 0.2
        %v881 = vmax.f32 %v863, %v877
        %v882 = vmax.f32 %v866, %v878
        %v883 = vmax.f32 %v871, %v879
        %v884 = vmax.f32 %v874, %v880
        %v885 = vpack.c.bf16 %v882, %v881
        %v886 = vpack.c.bf16 %v884, %v883
        %v887 = vld [vmem:[#allocation10] sm:$0xf]
        %v888 = vld [vmem:[#allocation10 + $0x4] sm:$0xf]
        %v889 = vld [vmem:[#allocation10 + $0x8] sm:$0xf]
        %v890 = vld [vmem:[#allocation10 + $0xc] sm:$0xf]
        %v891 = vld [vmem:[#allocation10 + $0x10] sm:$0xf]
        %v892 = vld [vmem:[#allocation10 + $0x14] sm:$0xf]
        %v893 = vld [vmem:[#allocation10 + $0x18] sm:$0xf]
        %v894 = vld [vmem:[#allocation10 + $0x1c] sm:$0xf]
        %v895 = vld [vmem:[#allocation10 + $0x20] sm:$0xf]
        %v896 = vld [vmem:[#allocation10 + $0x24] sm:$0xf]
        %v897 = vld [vmem:[#allocation10 + $0x28] sm:$0xf]
        %v898 = vld [vmem:[#allocation10 + $0x2c] sm:$0xf]
        %v899 = vld [vmem:[#allocation10 + $0x30] sm:$0xf]
        %v900 = vld [vmem:[#allocation10 + $0x34] sm:$0xf]
        %v901 = vld [vmem:[#allocation10 + $0x38] sm:$0xf]
        %v902 = vld [vmem:[#allocation10 + $0x3c] sm:$0xf]
        %v903 = vld [vmem:[%s9] sm:$0x1]
        %v905 = vlaneseq
        %v906 = vshrl.u32 %v905, 7
        %v907 = vsub.s32 0, %v906
        %v908 = vrot.slane %v903, %v907
        %v926 = vunpack.c.l.b16 %v887
        %v927 = vunpack.c.l.b16 %v888
        %v928 = vunpack.c.l.b16 %v889
        %v929 = vunpack.c.l.b16 %v890
        %v930 = vunpack.c.l.b16 %v891
        %v931 = vunpack.c.l.b16 %v892
        %v932 = vunpack.c.l.b16 %v893
        %v933 = vunpack.c.l.b16 %v894
        %v934 = vunpack.c.l.b16 %v895
        %v935 = vunpack.c.l.b16 %v896
        %v936 = vunpack.c.l.b16 %v897
        %v937 = vunpack.c.l.b16 %v898
        %v938 = vunpack.c.l.b16 %v899
        %v939 = vunpack.c.l.b16 %v900
        %v940 = vunpack.c.l.b16 %v901
        %v941 = vunpack.c.l.b16 %v902
        %v942 = vpack.c.b16 %v927, %v926
        %v943 = vpack.c.b16 %v929, %v928
        %v944 = vpack.c.b16 %v931, %v930
        %v945 = vpack.c.b16 %v933, %v932
        %v946 = vpack.c.b16 %v935, %v934
        %v947 = vpack.c.b16 %v937, %v936
        %v948 = vpack.c.b16 %v939, %v938
        %v949 = vpack.c.b16 %v941, %v940
        %958 = vmatprep.subr.bf16.mxu0 0
        %959 = vmatpush1.bf16.msra.mxu0 %v942
        %960 = vmatprep.subr.bf16.mxu0 0
        %961 = vmatpush1.bf16.msra.mxu0 %v943
        %962 = vmatprep.subr.bf16.mxu0 0
        %963 = vmatpush1.bf16.msra.mxu0 %v944
        %964 = vmatprep.subr.bf16.mxu0 0
        %965 = vmatpush1.bf16.msra.mxu0 %v945
        %966 = vmatprep.subr.bf16.mxu0 0
        %967 = vmatpush1.bf16.msra.mxu0 %v946
        %968 = vmatprep.subr.bf16.mxu0 0
        %969 = vmatpush1.bf16.msra.mxu0 %v947
        %970 = vmatprep.subr.bf16.mxu0 0
        %971 = vmatpush1.bf16.msra.mxu0 %v948
        %972 = vmatprep.subr.bf16.mxu0 0
        %973 = vmatpush1.bf16.msra.mxu0 %v949
        %974 = vmatprep.subr.bf16.mxu0 0
        %975 = vmatpush1.bf16.msra.mxu0 0
        %976 = vmatprep.subr.bf16.mxu0 0
        %977 = vmatpush1.bf16.msra.mxu0 0
        %978 = vmatprep.subr.bf16.mxu0 0
        %979 = vmatpush1.bf16.msra.mxu0 0
        %980 = vmatprep.subr.bf16.mxu0 0
        %981 = vmatpush1.bf16.msra.mxu0 0
        %982 = vmatprep.subr.bf16.mxu0 0
        %983 = vmatpush1.bf16.msra.mxu0 0
        %984 = vmatprep.subr.bf16.mxu0 0
        %985 = vmatpush1.bf16.msra.mxu0 0
        %986 = vmatprep.subr.bf16.mxu0 0
        %987 = vmatpush1.bf16.msra.mxu0 0
        %988 = vmatprep.subr.bf16.mxu0 0
        %989 = vmatpush1.bf16.msra.mxu0 0
        %990 = vmatprep.mubr.bf16.mxu0 0
        %991 = vmatmul.mubr.bf16.gmra.mrb[0].mxu0 %v885
        %v992 = vpop.f32.mrb[0].mxu0
        %v993 = vadd.f32 %v908, %v992
        %v994 = vpop.f32.mrb[0].mxu0
        %v995 = vpop.f32.mrb[0].mxu0
        %v996 = vadd.f32 %v908, %v995
        %v997 = vpop.f32.mrb[0].mxu0
        %998 = vmatprep.mubr.bf16.mxu0 0
        %999 = vmatmul.mubr.bf16.gmra.mrb[0].mxu0 %v886
        %v1000 = vpop.f32.mrb[0].mxu0
        %v1001 = vadd.f32 %v908, %v1000
        %v1002 = vpop.f32.mrb[0].mxu0
        %v1003 = vpop.f32.mrb[0].mxu0
        %v1004 = vadd.f32 %v908, %v1003
        %v1005 = vpop.f32.mrb[0].mxu0
        %1006 = vdwg.mxu0
        %v1007 = vmul.f32 %v993, 0.2
        %v1008 = vmul.f32 %v996, 0.2
        %v1009 = vmul.f32 %v1001, 0.2
        %v1010 = vmul.f32 %v1004, 0.2
        %v1011 = vmax.f32 %v993, %v1007
        %v1012 = vmax.f32 %v996, %v1008
        %v1013 = vmax.f32 %v1001, %v1009
        %v1014 = vmax.f32 %v1004, %v1010
        %v1015 = vpack.c.bf16 %v1012, %v1011
        %v1016 = vpack.c.bf16 %v1014, %v1013
        %v1017 = vld [vmem:[#allocation11] sm:$0xf]
        %v1018 = vld [vmem:[#allocation11 + $0x4] sm:$0xf]
        %v1019 = vld [vmem:[#allocation11 + $0x8] sm:$0xf]
        %v1020 = vld [vmem:[#allocation11 + $0xc] sm:$0xf]
        %v1021 = vld [vmem:[#allocation11 + $0x10] sm:$0xf]
        %v1022 = vld [vmem:[#allocation11 + $0x14] sm:$0xf]
        %v1023 = vld [vmem:[#allocation11 + $0x18] sm:$0xf]
        %v1024 = vld [vmem:[#allocation11 + $0x1c] sm:$0xf]
        %v1025 = vld [vmem:[#allocation11 + $0x20] sm:$0xf]
        %v1026 = vld [vmem:[#allocation11 + $0x24] sm:$0xf]
        %v1027 = vld [vmem:[#allocation11 + $0x28] sm:$0xf]
        %v1028 = vld [vmem:[#allocation11 + $0x2c] sm:$0xf]
        %v1029 = vld [vmem:[#allocation11 + $0x30] sm:$0xf]
        %v1030 = vld [vmem:[#allocation11 + $0x34] sm:$0xf]
        %v1031 = vld [vmem:[#allocation11 + $0x38] sm:$0xf]
        %v1032 = vld [vmem:[#allocation11 + $0x3c] sm:$0xf]
        %v1033 = vld [vmem:[%s10] sm:$0x1]
        %v1035 = vlaneseq
        %v1036 = vshrl.u32 %v1035, 7
        %v1037 = vsub.s32 0, %v1036
        %v1038 = vrot.slane %v1033, %v1037
        %v1056 = vunpack.c.l.b16 %v1017
        %v1057 = vunpack.c.l.b16 %v1018
        %v1058 = vunpack.c.l.b16 %v1019
        %v1059 = vunpack.c.l.b16 %v1020
        %v1060 = vunpack.c.l.b16 %v1021
        %v1061 = vunpack.c.l.b16 %v1022
        %v1062 = vunpack.c.l.b16 %v1023
        %v1063 = vunpack.c.l.b16 %v1024
        %v1064 = vunpack.c.l.b16 %v1025
        %v1065 = vunpack.c.l.b16 %v1026
        %v1066 = vunpack.c.l.b16 %v1027
        %v1067 = vunpack.c.l.b16 %v1028
        %v1068 = vunpack.c.l.b16 %v1029
        %v1069 = vunpack.c.l.b16 %v1030
        %v1070 = vunpack.c.l.b16 %v1031
        %v1071 = vunpack.c.l.b16 %v1032
        %v1072 = vpack.c.b16 %v1057, %v1056
        %v1073 = vpack.c.b16 %v1059, %v1058
        %v1074 = vpack.c.b16 %v1061, %v1060
        %v1075 = vpack.c.b16 %v1063, %v1062
        %v1076 = vpack.c.b16 %v1065, %v1064
        %v1077 = vpack.c.b16 %v1067, %v1066
        %v1078 = vpack.c.b16 %v1069, %v1068
        %v1079 = vpack.c.b16 %v1071, %v1070
        %1088 = vmatprep.subr.bf16.mxu0 0
        %1089 = vmatpush1.bf16.msra.mxu0 %v1072
        %1090 = vmatprep.subr.bf16.mxu0 0
        %1091 = vmatpush1.bf16.msra.mxu0 %v1073
        %1092 = vmatprep.subr.bf16.mxu0 0
        %1093 = vmatpush1.bf16.msra.mxu0 %v1074
        %1094 = vmatprep.subr.bf16.mxu0 0
        %1095 = vmatpush1.bf16.msra.mxu0 %v1075
        %1096 = vmatprep.subr.bf16.mxu0 0
        %1097 = vmatpush1.bf16.msra.mxu0 %v1076
        %1098 = vmatprep.subr.bf16.mxu0 0
        %1099 = vmatpush1.bf16.msra.mxu0 %v1077
        %1100 = vmatprep.subr.bf16.mxu0 0
        %1101 = vmatpush1.bf16.msra.mxu0 %v1078
        %1102 = vmatprep.subr.bf16.mxu0 0
        %1103 = vmatpush1.bf16.msra.mxu0 %v1079
        %1104 = vmatprep.subr.bf16.mxu0 0
        %1105 = vmatpush1.bf16.msra.mxu0 0
        %1106 = vmatprep.subr.bf16.mxu0 0
        %1107 = vmatpush1.bf16.msra.mxu0 0
        %1108 = vmatprep.subr.bf16.mxu0 0
        %1109 = vmatpush1.bf16.msra.mxu0 0
        %1110 = vmatprep.subr.bf16.mxu0 0
        %1111 = vmatpush1.bf16.msra.mxu0 0
        %1112 = vmatprep.subr.bf16.mxu0 0
        %1113 = vmatpush1.bf16.msra.mxu0 0
        %1114 = vmatprep.subr.bf16.mxu0 0
        %1115 = vmatpush1.bf16.msra.mxu0 0
        %1116 = vmatprep.subr.bf16.mxu0 0
        %1117 = vmatpush1.bf16.msra.mxu0 0
        %1118 = vmatprep.subr.bf16.mxu0 0
        %1119 = vmatpush1.bf16.msra.mxu0 0
        %1120 = vmatprep.mubr.bf16.mxu0 0
        %1121 = vmatmul.mubr.bf16.gmra.mrb[0].mxu0 %v1015
        %v1122 = vpop.f32.mrb[0].mxu0
        %v1123 = vadd.f32 %v1038, %v1122
        %v1124 = vpop.f32.mrb[0].mxu0
        %v1125 = vpop.f32.mrb[0].mxu0
        %v1126 = vadd.f32 %v1038, %v1125
        %v1127 = vpop.f32.mrb[0].mxu0
        %1128 = vmatprep.mubr.bf16.mxu0 0
        %1129 = vmatmul.mubr.bf16.gmra.mrb[0].mxu0 %v1016
        %v1130 = vpop.f32.mrb[0].mxu0
        %v1131 = vadd.f32 %v1038, %v1130
        %v1132 = vpop.f32.mrb[0].mxu0
        %v1133 = vpop.f32.mrb[0].mxu0
        %v1134 = vadd.f32 %v1038, %v1133
        %v1135 = vpop.f32.mrb[0].mxu0
        %1136 = vdwg.mxu0
        %v1137 = vxor.u32 %v1123, 2147483648
        %v1138 = vxor.u32 %v1126, 2147483648
        %v1139 = vxor.u32 %v1131, 2147483648
        %v1140 = vxor.u32 %v1134, 2147483648
        %v1141 = vmul.f32 %v1137, 1.442695
        %v1142 = vpow.pop %v1141
        %v1143 = vmul.f32 %v1138, 1.442695
        %v1144 = vpow.pop %v1143
        %v1145 = vmul.f32 %v1139, 1.442695
        %v1146 = vpow.pop %v1145
        %v1147 = vmul.f32 %v1140, 1.442695
        %v1148 = vpow.pop %v1147
        %v1149 = vadd.f32 %v1142, 1.0
        %v1150 = vadd.f32 %v1144, 1.0
        %v1151 = vadd.f32 %v1146, 1.0
        %v1152 = vadd.f32 %v1148, 1.0
        %v1153 = vrcp.pop %v1149
        %v1154 = vmul.f32 1.0, %v1153
        %v1155 = vrcp.pop %v1150
        %v1156 = vmul.f32 1.0, %v1155
        %v1157 = vrcp.pop %v1151
        %v1158 = vmul.f32 1.0, %v1157
        %v1159 = vrcp.pop %v1152
        %v1160 = vmul.f32 1.0, %v1159
        %v1161 = vpack.c.bf16 %v1156, %v1154
        %v1162 = vpack.c.bf16 %v1160, %v1158
        %v1165 = vunpack.c.l.b16 %v1161
        %v1166 = vunpack.c.h.b16 %v1161
        %v1167 = vunpack.c.l.b16 %v1162
        %v1168 = vunpack.c.h.b16 %v1162
        %v1169 = vpack.c.b16 %v1165, %v1165
        %v1170 = vpack.c.b16 %v1166, %v1166
        %v1171 = vpack.c.b16 %v1167, %v1167
        %v1172 = vpack.c.b16 %v1168, %v1168
        %1177 = vst [vmem:[%s477] sm:$0xf] %v1169
        %1178 = vst [vmem:[%s477 + $0x4] sm:$0xf] %v1170
        %1179 = vst [vmem:[%s477 + $0x8] sm:$0xf] %v1171
        %1180 = vst [vmem:[%s477 + $0xc] sm:$0xf] %v1172
        %s1181 = sand.u32 %s275, 1
        %s1182 = scalar_lea.sflag [#allocation4], %s1181
        %s1183 = sand.u32 %s275, 1
        %s1184 = smul.addr %s1183, 16
        %s1185 = scalar_lea.vmem [#allocation13], %s1184
        // Predicated region
        $region89: #{tpu_custom_call.1} parent=63 // pred_check
          %p1186 = pneg %p285
        $region90: #{tpu_custom_call.1} parent=63 // pred_check_branch
          %1188 = sbr.rel (%p1186) target = $region92
        $region91: #{tpu_custom_call.1} parent=63 // pred_region
          %s1189 = smul.u32 4, %s31
          %s1191 = ssub.s32 256, 256
          %1192 = vsyncadd %s1182, %s1191
          %s1193 = smul.addr %s1189, 64
          %s1194 = scalar_lea.hbm %s11, %s1193
          %s1195 = sshll.u32 %s1185, 4
          %s1196 = int_to_ptr.vmem [resolvable:$true] %s1195
          %1201 = dma.vmem_to_hbm [thread:$0]  %s1196, 256, %s1194, %s1182, 64, 64, 4
        $region92: #{tpu_custom_call.1} parent=63 // pred_fallthru
          _
      $region64: #{tpu_custom_call.1} parent=5 // pred_fallthru
        _
      %p1202 = scmp.le.s32.totalorder 2, %s26
      // Predicated region
      $region93: #{tpu_custom_call.1} parent=5 // pred_check
        %p1203 = pneg %p1202
      $region94: #{tpu_custom_call.1} parent=5 // pred_check_branch
        %1205 = sbr.rel (%p1203) target = $region96
      $region95: #{tpu_custom_call.1} parent=5 // pred_region
        %s1206 = ssub.s32 %s26, 2
        // Predicated region
        $region97: #{tpu_custom_call.1} parent=95 // pred_check
          %p1207 = pneg %p291
        $region98: #{tpu_custom_call.1} parent=95 // pred_check_branch
          %1209 = sbr.rel (%p1207) target = $region100
        $region99: #{tpu_custom_call.1} parent=95 // pred_region
          %s1210 = sand.u32 %s276, 1
          %s1211 = scalar_lea.sflag [#allocation4], %s1210
          %s1212 = sand.u32 %s276, 1
          %s1213 = smul.addr %s1212, 16
          %s1214 = scalar_lea.vmem [#allocation13], %s1213
          %1215 = dma.done %s1211, 256
        $region100: #{tpu_custom_call.1} parent=95 // pred_fallthru
          _
      $region96: #{tpu_custom_call.1} parent=5 // pred_fallthru
        _
    $region6: #{tpu_custom_call.1} parent=1 // loop_footer
      %s30 = sadd.s32 1, %s26
    $region7: #{tpu_custom_call.1} parent=1 // loop_footer_branch
      %25 = sbr.rel target = $region3
    $region8: #{tpu_custom_call.1} parent=1 // loop_exit
      _
    %1216 = vsyncpa [#allocation3], 1
    %s1217 = scalar_lea.sflag [#allocation3], 1
    %1218 = vsyncpa %s1217, 1
    %1219 = vsyncpa [#allocation6], 1
    %1220 = vsyncpa [#allocation9], 1
    %1221 = vsyncpa [#allocation12], 1
    %1222 = vsyncpa [#allocation4], 1
    %s1223 = scalar_lea.sflag [#allocation4], 1
    %1224 = vsyncpa %s1223, 1

</llo_original>
